<compile_context>
chip_gen: v7x
topology: tpu7x:2x2x1
jax: 0.10.0
libtpu: 0.0.40
codegen_flags: <defaults>
</compile_context>

<pallas_src>
import functools

import jax
import jax.numpy as jnp
from jax.experimental import pallas as pl
from jax.experimental.pallas import tpu as pltpu


# ---------------------------------------------------------------------------
# Kernel 1: whole-sequence-per-batch fallback (general kernel_size / stride).
#   One grid step = one batch row.  The replicate-padded sequence is built in a
#   VMEM scratch, then the k taps are accumulated with (optionally strided)
#   sublane slices, producing only the L_out strided outputs.
# ---------------------------------------------------------------------------
def _ma_full_kernel(x_ref, o_ref, xp_ref, *, k, s, p, L, L_out, C):
    # x_ref: (1, L, C)   o_ref: (1, L_out, C)   xp_ref: (1, L + 2p, C) scratch
    xp_ref[:, p:p + L, :] = x_ref[...]
    if p > 0:
        first = x_ref[:, 0:1, :]
        last = x_ref[:, L - 1:L, :]
        xp_ref[:, 0:p, :] = jnp.broadcast_to(first, (1, p, C))
        xp_ref[:, p + L:p + L + p, :] = jnp.broadcast_to(last, (1, p, C))

    acc = jnp.zeros((1, L_out, C), jnp.float32)
    for j in range(k):  # small static unroll over the taps
        if s == 1:
            tap = xp_ref[:, pl.ds(j, L_out), :]
        else:
            tap = xp_ref[:, pl.ds(j, L_out, stride=s), :]
        acc = acc + tap.astype(jnp.float32)
    o_ref[...] = (acc * (1.0 / k)).astype(o_ref.dtype)


# ---------------------------------------------------------------------------
# Kernel 2: time-tiled path (stride == 1, odd kernel_size).
#   grid = (B, L // TI).  Per step the kernel sees:
#     fh_ref: (1, TH, C)  TH-row block ending exactly at the tile start (front halo)
#     xm_ref: (1, TI, C)  the current tile of input rows
#     bh_ref: (1, TH, C)  TH-row block starting right after the tile (back halo)
#   It builds a locally padded buffer xp (1, TI + k - 1, C) in VMEM and
#   accumulates the k taps from it.  The replicate padding for the global
#   sequence edges is generated in-kernel on the first / last tile.
# ---------------------------------------------------------------------------
def _ma_tiled_kernel(fh_ref, xm_ref, bh_ref, o_ref, xp_ref, *, k, p, TI, TH, C):
    t = pl.program_id(1)
    nt = pl.num_programs(1)
    q = k - 1 - p  # trailing halo rows needed

    # middle: the tile itself
    xp_ref[:, p:p + TI, :] = xm_ref[...]

    if p > 0:
        @pl.when(t == 0)
        def _():  # global front edge -> replicate first row of the sequence
            xp_ref[:, 0:p, :] = jnp.broadcast_to(xm_ref[:, 0:1, :], (1, p, C))

        @pl.when(t > 0)
        def _():  # interior tile -> last p rows of the preceding TH-block
            xp_ref[:, 0:p, :] = fh_ref[:, TH - p:TH, :]

    if q > 0:
        @pl.when(t == nt - 1)
        def _():  # global back edge -> replicate last row of the sequence
            xp_ref[:, p + TI:p + TI + q, :] = jnp.broadcast_to(
                xm_ref[:, TI - 1:TI, :], (1, q, C))

        @pl.when(t < nt - 1)
        def _():  # interior tile -> first q rows of the following TH-block
            xp_ref[:, p + TI:p + TI + q, :] = bh_ref[:, 0:q, :]

    acc = jnp.zeros((1, TI, C), jnp.float32)
    for j in range(k):
        acc = acc + xp_ref[:, pl.ds(j, TI), :].astype(jnp.float32)
    o_ref[...] = (acc * (1.0 / k)).astype(o_ref.dtype)


# ---------------------------------------------------------------------------
# Wrapper
# ---------------------------------------------------------------------------
def _round_up(v, m):
    return ((v + m - 1) // m) * m


def _vmem_limit_bytes(block_bytes, scratch_bytes):
    # ~2x for double-buffered pipelined blocks + scratch + headroom.
    need = 2 * block_bytes + scratch_bytes + (2 << 20)
    return int(min(max(need, 32 << 20), 100 << 20))


def _pick_time_tile(L, C, itemsize, k, s):
    """Auto heuristic: tile the time axis only when a whole sequence is VMEM-heavy."""
    if s != 1 or k % 2 == 0 or k > L:
        return None
    if L * C * itemsize <= (8 << 20):
        return None  # a whole (1, L, C) block per batch row is cheap enough
    p = (k - 1) // 2
    TH = _round_up(max(p, k - 1 - p, 1), 8)
    for ti in (1024, 512, 256, 128):
        if ti >= TH and ti % TH == 0 and L % ti == 0 and L // ti >= 2:
            return ti
    # TODO(synk): ragged L (no suitable divisor) still falls back to whole-sequence blocks.
    return None


def moving_avg(x, kernel_size, stride, *, time_tile=None):
    """Moving average over the time axis: x (B, L, C) -> (B, L_out, C).

    Matches the PyTorch `moving_avg` module (replicate pad + AvgPool1d) exactly.
    """
    B, L, C = x.shape
    k, s = int(kernel_size), int(stride)
    p = (k - 1) // 2
    L_pad = L + 2 * p
    L_out = (L_pad - k) // s + 1
    isz = x.dtype.itemsize

    if time_tile is None:
        time_tile = _pick_time_tile(L, C, isz, k, s)

    if time_tile is not None:
        if s != 1 or k % 2 == 0:
            raise ValueError("time-tiled path requires stride == 1 and odd kernel_size")
        TI = int(time_tile)
        TH = _round_up(max(p, k - 1 - p, 1), 8)
        if TI < TH or TI % TH != 0 or L % TI != 0:
            raise ValueError(f"invalid time_tile={TI} for L={L}, kernel_size={k}")
        nt = L // TI
        R = TI // TH  # number of TH-blocks per tile

        kern = functools.partial(_ma_tiled_kernel, k=k, p=p, TI=TI, TH=TH, C=C)
        block_bytes = (TI + 2 * TH) * C * isz + TI * C * isz
        scratch_bytes = (TI + k - 1) * C * isz

        return pl.pallas_call(
            kern,
            out_shape=jax.ShapeDtypeStruct((B, L_out, C), x.dtype),
            grid_spec=pltpu.PrefetchScalarGridSpec(
                num_scalar_prefetch=0,
                grid=(B, nt),
                in_specs=[
                    # front halo: TH rows ending at the current tile's start
                    pl.BlockSpec((1, TH, C),
                                 lambda b, t: (b, jnp.maximum(t * R - 1, 0), 0)),
                    # the tile itself
                    pl.BlockSpec((1, TI, C), lambda b, t: (b, t, 0)),
                    # back halo: TH rows starting right after the current tile
                    pl.BlockSpec((1, TH, C),
                                 lambda b, t: (b, jnp.minimum((t + 1) * R, L // TH - 1), 0)),
                ],
                out_specs=pl.BlockSpec((1, TI, C), lambda b, t: (b, t, 0)),
                scratch_shapes=[pltpu.VMEM((1, TI + k - 1, C), x.dtype)],
            ),
            compiler_params=pltpu.CompilerParams(
                dimension_semantics=("parallel", "parallel"),
                vmem_limit_bytes=_vmem_limit_bytes(block_bytes, scratch_bytes),
            ),
        )(x, x, x)

    # Fallback: whole sequence per batch element (general kernel_size / stride).
    kern = functools.partial(_ma_full_kernel, k=k, s=s, p=p, L=L, L_out=L_out, C=C)
    block_bytes = L * C * isz + L_out * C * isz
    scratch_bytes = L_pad * C * isz
    # TODO(synk): when C < 128 the output stores are lane-masked; a lane-dense
    # (L, B*C) layout would need an extra transpose pass, so it is not done here.
    return pl.pallas_call(
        kern,
        out_shape=jax.ShapeDtypeStruct((B, L_out, C), x.dtype),
        grid_spec=pltpu.PrefetchScalarGridSpec(
            num_scalar_prefetch=0,
            grid=(B,),
            in_specs=[pl.BlockSpec((1, L, C), lambda b: (b, 0, 0))],
            out_specs=pl.BlockSpec((1, L_out, C), lambda b: (b, 0, 0)),
            scratch_shapes=[pltpu.VMEM((1, L_pad, C), x.dtype)],
        ),
        compiler_params=pltpu.CompilerParams(
            dimension_semantics=("parallel",),
            vmem_limit_bytes=_vmem_limit_bytes(block_bytes, scratch_bytes),
        ),
    )(x)


# ---------------------------------------------------------------------------
# Pure-jnp reference mirroring the PyTorch forward.
# ---------------------------------------------------------------------------
def _reference(x, kernel_size, stride):
    pad = (kernel_size - 1) // 2
    front = jnp.repeat(x[:, 0:1, :], pad, axis=1)
    end = jnp.repeat(x[:, -1:, :], pad, axis=1)
    xp = jnp.concatenate([front, x, end], axis=1)  # (B, L_pad, C)
    L_pad = xp.shape[1]
    L_out = (L_pad - kernel_size) // stride + 1
    cols = [
        jnp.mean(xp[:, t * stride: t * stride + kernel_size, :], axis=1)
        for t in range(L_out)
    ]
    return jnp.stack(cols, axis=1)


if __name__ == "__main__":
    key = jax.random.PRNGKey(0)
    cases = [
        # (B, L, C, kernel_size, stride, time_tile)
        (2, 64, 32, 5, 1, 16),    # time-tiled path: 4 tiles, halos + edge replicate
        (2, 16, 32, 5, 1, None),  # whole-sequence path, odd kernel
        (2, 16, 32, 4, 1, None),  # even kernel_size (PyTorch pads (k-1)//2 each side)
        (2, 16, 32, 5, 2, None),  # stride folded into the kernel (strided taps)
    ]
    for i, (B, L, C, k, s, tt) in enumerate(cases):
        key, sub = jax.random.split(key)
        x = jax.random.normal(sub, (B, L, C), dtype=jnp.float32)
        out = jax.block_until_ready(moving_avg(x, k, s, time_tile=tt))
        ref = _reference(x, k, s)
        assert out.shape == ref.shape, (i, out.shape, ref.shape)
        assert jnp.allclose(out, ref, atol=1e-5, rtol=1e-5), f"case {i} mismatch"
    print("KERNEL_OK")
</pallas_src>

<mosaic_0001>
module attributes {stable_mosaic.version = 11 : i64} {
  func.func @_ma_tiled_kernel(%arg0: i32, %arg1: i32, %arg2: memref<1x8x32xf32, #tpu.memory_space<vmem>>, %arg3: memref<1x16x32xf32, #tpu.memory_space<vmem>>, %arg4: memref<1x8x32xf32, #tpu.memory_space<vmem>>, %arg5: memref<1x16x32xf32, #tpu.memory_space<vmem>>, %arg6: memref<1x20x32xf32, #tpu.memory_space<vmem>>) attributes {dimension_semantics = [#tpu.dimension_semantics<parallel>, #tpu.dimension_semantics<parallel>], iteration_bounds = array<i64: 2, 4>, scalar_prefetch = 0 : i64, scratch_operands = 1 : i64, tpu.core_type = #tpu.core_type<tc>, window_params = [{transform_indices = @transform_0, window_bounds = array<i64: 1, 8, 32>}, {transform_indices = @transform_1, window_bounds = array<i64: 1, 16, 32>}, {transform_indices = @transform_2, window_bounds = array<i64: 1, 8, 32>}, {transform_indices = @transform_3, window_bounds = array<i64: 1, 16, 32>}]} {
    %c0 = arith.constant 0 : index
    %c0_0 = arith.constant 0 : index
    %c0_1 = arith.constant 0 : index
    %0 = vector.load %arg3[%c0, %c0_0, %c0_1] : memref<1x16x32xf32, #tpu.memory_space<vmem>>, vector<1x16x32xf32>
    %c0_2 = arith.constant 0 : index
    %c2 = arith.constant 2 : index
    %c0_3 = arith.constant 0 : index
    %1 = vector.load %arg6[%c0_2, %c2, %c0_3] : memref<1x20x32xf32, #tpu.memory_space<vmem>>, vector<1x16x32xf32>
    tpu.vector_store %arg6[%c0_2, %c2, %c0_3], %0 {strides = array<i32>} : memref<1x20x32xf32, #tpu.memory_space<vmem>>, vector<1x16x32xf32>,
    %c0_i32 = arith.constant 0 : i32
    %2 = arith.cmpi eq, %arg1, %c0_i32 : i32
    %3 = arith.extui %2 : i1 to i32
    %c0_i32_4 = arith.constant 0 : i32
    %4 = arith.cmpi ne, %3, %c0_i32_4 : i32
    scf.if %4 {
      %c0_26 = arith.constant 0 : index
      %c0_27 = arith.constant 0 : index
      %c0_28 = arith.constant 0 : index
      %28 = vector.load %arg3[%c0_26, %c0_27, %c0_28] : memref<1x16x32xf32, #tpu.memory_space<vmem>>, vector<1x1x32xf32>
      %29 = vector.shape_cast %28 : vector<1x1x32xf32> to vector<1x1x32xf32>
      %30 = vector.broadcast %29 : vector<1x1x32xf32> to vector<1x2x32xf32>
      %c0_29 = arith.constant 0 : index
      %c0_30 = arith.constant 0 : index
      %c0_31 = arith.constant 0 : index
      %31 = vector.load %arg6[%c0_29, %c0_30, %c0_31] : memref<1x20x32xf32, #tpu.memory_space<vmem>>, vector<1x2x32xf32>
      tpu.vector_store %arg6[%c0_29, %c0_30, %c0_31], %30 {strides = array<i32>} : memref<1x20x32xf32, #tpu.memory_space<vmem>>, vector<1x2x32xf32>,
    } else {
    }
    %c0_i32_5 = arith.constant 0 : i32
    %5 = arith.cmpi sgt, %arg1, %c0_i32_5 : i32
    %6 = arith.extui %5 : i1 to i32
    %c0_i32_6 = arith.constant 0 : i32
    %7 = arith.cmpi ne, %6, %c0_i32_6 : i32
    scf.if %7 {
      %c0_26 = arith.constant 0 : index
      %c6 = arith.constant 6 : index
      %c0_27 = arith.constant 0 : index
      %28 = vector.load %arg2[%c0_26, %c6, %c0_27] : memref<1x8x32xf32, #tpu.memory_space<vmem>>, vector<1x2x32xf32>
      %c0_28 = arith.constant 0 : index
      %c0_29 = arith.constant 0 : index
      %c0_30 = arith.constant 0 : index
      %29 = vector.load %arg6[%c0_28, %c0_29, %c0_30] : memref<1x20x32xf32, #tpu.memory_space<vmem>>, vector<1x2x32xf32>
      tpu.vector_store %arg6[%c0_28, %c0_29, %c0_30], %28 {strides = array<i32>} : memref<1x20x32xf32, #tpu.memory_space<vmem>>, vector<1x2x32xf32>,
    } else {
    }
    %c3_i32 = arith.constant 3 : i32
    %8 = arith.cmpi eq, %arg1, %c3_i32 : i32
    %9 = arith.extui %8 : i1 to i32
    %c0_i32_7 = arith.constant 0 : i32
    %10 = arith.cmpi ne, %9, %c0_i32_7 : i32
    scf.if %10 {
      %c0_26 = arith.constant 0 : index
      %c15 = arith.constant 15 : index
      %c0_27 = arith.constant 0 : index
      %28 = vector.load %arg3[%c0_26, %c15, %c0_27] : memref<1x16x32xf32, #tpu.memory_space<vmem>>, vector<1x1x32xf32>
      %29 = vector.shape_cast %28 : vector<1x1x32xf32> to vector<1x1x32xf32>
      %30 = vector.broadcast %29 : vector<1x1x32xf32> to vector<1x2x32xf32>
      %c0_28 = arith.constant 0 : index
      %c18 = arith.constant 18 : index
      %c0_29 = arith.constant 0 : index
      %31 = vector.load %arg6[%c0_28, %c18, %c0_29] : memref<1x20x32xf32, #tpu.memory_space<vmem>>, vector<1x2x32xf32>
      tpu.vector_store %arg6[%c0_28, %c18, %c0_29], %30 {strides = array<i32>} : memref<1x20x32xf32, #tpu.memory_space<vmem>>, vector<1x2x32xf32>,
    } else {
    }
    %c3_i32_8 = arith.constant 3 : i32
    %11 = arith.cmpi slt, %arg1, %c3_i32_8 : i32
    %12 = arith.extui %11 : i1 to i32
    %c0_i32_9 = arith.constant 0 : i32
    %13 = arith.cmpi ne, %12, %c0_i32_9 : i32
    scf.if %13 {
      %c0_26 = arith.constant 0 : index
      %c0_27 = arith.constant 0 : index
      %c0_28 = arith.constant 0 : index
      %28 = vector.load %arg4[%c0_26, %c0_27, %c0_28] : memref<1x8x32xf32, #tpu.memory_space<vmem>>, vector<1x2x32xf32>
      %c0_29 = arith.constant 0 : index
      %c18 = arith.constant 18 : index
      %c0_30 = arith.constant 0 : index
      %29 = vector.load %arg6[%c0_29, %c18, %c0_30] : memref<1x20x32xf32, #tpu.memory_space<vmem>>, vector<1x2x32xf32>
      tpu.vector_store %arg6[%c0_29, %c18, %c0_30], %28 {strides = array<i32>} : memref<1x20x32xf32, #tpu.memory_space<vmem>>, vector<1x2x32xf32>,
    } else {
    }
    %cst = arith.constant 0.000000e+00 : f32
    %14 = vector.broadcast %cst : f32 to vector<1x16x32xf32>
    %c0_10 = arith.constant 0 : index
    %c0_11 = arith.constant 0 : index
    %c0_12 = arith.constant 0 : index
    %15 = vector.load %arg6[%c0_10, %c0_11, %c0_12] : memref<1x20x32xf32, #tpu.memory_space<vmem>>, vector<1x16x32xf32>
    %16 = arith.addf %14, %15 : vector<1x16x32xf32>
    %c0_13 = arith.constant 0 : index
    %c1 = arith.constant 1 : index
    %c0_14 = arith.constant 0 : index
    %17 = vector.load %arg6[%c0_13, %c1, %c0_14] : memref<1x20x32xf32, #tpu.memory_space<vmem>>, vector<1x16x32xf32>
    %18 = arith.addf %16, %17 : vector<1x16x32xf32>
    %c0_15 = arith.constant 0 : index
    %c2_16 = arith.constant 2 : index
    %c0_17 = arith.constant 0 : index
    %19 = vector.load %arg6[%c0_15, %c2_16, %c0_17] : memref<1x20x32xf32, #tpu.memory_space<vmem>>, vector<1x16x32xf32>
    %20 = arith.addf %18, %19 : vector<1x16x32xf32>
    %c0_18 = arith.constant 0 : index
    %c3 = arith.constant 3 : index
    %c0_19 = arith.constant 0 : index
    %21 = vector.load %arg6[%c0_18, %c3, %c0_19] : memref<1x20x32xf32, #tpu.memory_space<vmem>>, vector<1x16x32xf32>
    %22 = arith.addf %20, %21 : vector<1x16x32xf32>
    %c0_20 = arith.constant 0 : index
    %c4 = arith.constant 4 : index
    %c0_21 = arith.constant 0 : index
    %23 = vector.load %arg6[%c0_20, %c4, %c0_21] : memref<1x20x32xf32, #tpu.memory_space<vmem>>, vector<1x16x32xf32>
    %24 = arith.addf %22, %23 : vector<1x16x32xf32>
    %cst_22 = arith.constant 2.000000e-01 : f32
    %25 = vector.broadcast %cst_22 : f32 to vector<1x16x32xf32>
    %26 = arith.mulf %24, %25 : vector<1x16x32xf32>
    %c0_23 = arith.constant 0 : index
    %c0_24 = arith.constant 0 : index
    %c0_25 = arith.constant 0 : index
    %27 = vector.load %arg5[%c0_23, %c0_24, %c0_25] : memref<1x16x32xf32, #tpu.memory_space<vmem>>, vector<1x16x32xf32>
    tpu.vector_store %arg5[%c0_23, %c0_24, %c0_25], %26 {strides = array<i32>} : memref<1x16x32xf32, #tpu.memory_space<vmem>>, vector<1x16x32xf32>,
    return
  }
  func.func @transform_0(%arg0: i32, %arg1: i32) -> (i32, i32, i32) {
    %c2_i32 = arith.constant 2 : i32
    %0 = arith.muli %arg1, %c2_i32 : i32
    %c1_i32 = arith.constant 1 : i32
    %1 = arith.subi %0, %c1_i32 : i32
    %c0_i32 = arith.constant 0 : i32
    %2 = arith.maxsi %1, %c0_i32 : i32
    %c0_i32_0 = arith.constant 0 : i32
    %c0_i32_1 = arith.constant 0 : i32
    return %arg0, %2, %c0_i32_0 : i32, i32, i32
  }
  func.func @transform_1(%arg0: i32, %arg1: i32) -> (i32, i32, i32) {
    %c0_i32 = arith.constant 0 : i32
    %c0_i32_0 = arith.constant 0 : i32
    return %arg0, %arg1, %c0_i32 : i32, i32, i32
  }
  func.func @transform_2(%arg0: i32, %arg1: i32) -> (i32, i32, i32) {
    %c1_i32 = arith.constant 1 : i32
    %0 = arith.addi %arg1, %c1_i32 : i32
    %c2_i32 = arith.constant 2 : i32
    %1 = arith.muli %0, %c2_i32 : i32
    %c7_i32 = arith.constant 7 : i32
    %2 = arith.minsi %1, %c7_i32 : i32
    %c0_i32 = arith.constant 0 : i32
    %c0_i32_0 = arith.constant 0 : i32
    return %arg0, %2, %c0_i32 : i32, i32, i32
  }
  func.func @transform_3(%arg0: i32, %arg1: i32) -> (i32, i32, i32) {
    %c0_i32 = arith.constant 0 : i32
    %c0_i32_0 = arith.constant 0 : i32
    return %arg0, %arg1, %c0_i32 : i32, i32, i32
  }
}

</mosaic_0001>

<llo_original>
// kernel: tpu_custom_call.1
$region0: #{tpu_custom_call.1}
  #allocation0 [shape = 'u32[]', space=smem, size = 0x4, offset = 0x4, fixed_abs, tag = 'smem constant byte address 0x4 - core index']
  #allocation1 [shape = 'u32[144,128]{1,0:T(1,128)}', space=vmem, size = 0x12000, scoped, tag = 'internal scratch']
  #allocation2 [shape = 'f32[1,20,32]{2,1,0:T(8,128)}', space=vmem, size = 0x3000, scoped, tag = 'scratch operand']
  %s0 = inlined_call_operand.vmem [shape: f32[2,64,32], index: 0, kind: input, shape index: {}]
  %s1 = inlined_call_operand.vmem [shape: f32[2,64,32], index: 1, kind: input, shape index: {}]
  %s2 = inlined_call_operand.vmem [shape: f32[2,64,32], index: 2, kind: input, shape index: {}]
  %s3 = inlined_call_operand.vmem [shape: f32[2,64,32], index: 3, kind: output, shape index: {}]
  %s4 = sld [smem:[#allocation0]]
  $region61: #{tpu_custom_call.1} parent=0
    _
  %s6 = ssub.s32 1, %s4
  %s7 = scalar_select 0, %s6, %s4
  loop: start=0, step=1, limit=10
  $region2: #{tpu_custom_call.1} parent=0 // loop_pre_header
    _
  $region3: #{tpu_custom_call.1} parent=0 // loop_header
    %s9 = sphi 0, %s13
    %p10 = scmp.ge.s32.totalorder %s9, 10
    %s16 = sphi 0, %s28
    %s17 = sphi 0, %s24
    %s18 = sphi 0, %s16
    %s19 = sphi 0, %s17
    %s20 = sphi 0, %s18
    %s21 = sphi 0, %s19
    %s41 = sphi 0, %s43
    %s44 = sphi 0, %s41
    %s45 = sphi 0, %s44
    %s61 = sphi 0, %s45
    %s69 = sphi 0, %s71
    %s72 = sphi 0, %s69
    %s73 = sphi 0, %s72
    %s89 = sphi 0, %s73
    %s105 = sphi 0, %s107
    %s108 = sphi 0, %s105
    %s109 = sphi 0, %s108
    %s125 = sphi 0, %s109
    %s133 = sphi 0, %s135
    %s136 = sphi 0, %s133
    %s137 = sphi 0, %s136
    %s153 = sphi 0, %s137
  $region4: #{tpu_custom_call.1} parent=0 // loop_header_branch
    %12 = sbr.rel (%p10) target = $region8
  $region5: #{tpu_custom_call.1} parent=0 // loop_body
    %s14 = ssub.s32 %s9, 1
    %s15 = ssub.s32 %s9, 2
    %s22 = sadd.s32 1, %s17
    %p23 = scmp.ge.s32.totalorder %s22, 4
    %s24 = scalar_select %p23, 0, %s22
    %s25 = sadd.s32 1, %s16
    %s26 = scalar_select %p23, %s25, %s16
    %p27 = scmp.ge.s32.totalorder %s26, 2
    %s28 = scalar_select %p27, 0, %s26
    %s29 = smul.u32 %s17, 2
    %s30 = ssub.s32 %s29, 1
    %p31 = scmp.gt.s32.totalorder %s30, 0
    %s32 = scalar_select %p31, %s30, 0
    %s33 = smul.u32 %s24, 2
    %s34 = ssub.s32 %s33, 1
    %p35 = scmp.gt.s32.totalorder %s34, 0
    %s36 = scalar_select %p35, %s34, 0
    %s37 = ssub.s32 %s16, %s28
    %s38 = ssub.s32 %s32, %s36
    %s39 = sor.u32 %s37, %s38
    %p40 = scmp.eq.s32.totalorder %s39, 0
    %s42 = sadd.s32 %s41, 1
    %s43 = scalar_select %p40, %s41, %s42
    %p46 = pneg %p40
    %p47 = scmp.eq.s32.totalorder %s9, 7
    %p48 = por %p46, %p47
    %p49 = scmp.ne.s32.totalorder %s41, %s44
    %p50 = scmp.eq.s32.totalorder %s9, 0
    %p51 = por %p49, %p50
    %p52 = scmp.ne.s32.totalorder %s41, %s44
    %p53 = scmp.eq.s32.totalorder %s14, 7
    %p54 = por %p52, %p53
    %p55 = scmp.ne.s32.totalorder %s44, %s45
    %p56 = scmp.eq.s32.totalorder %s14, 0
    %p57 = por %p55, %p56
    %p58 = scmp.ne.s32.totalorder %s44, %s45
    %p59 = scmp.eq.s32.totalorder %s15, 7
    %p60 = por %p58, %p59
    %p62 = scmp.ne.s32.totalorder %s45, %s61
    %p63 = scmp.eq.s32.totalorder %s15, 0
    %p64 = por %p62, %p63
    %s65 = ssub.s32 %s16, %s28
    %s66 = ssub.s32 %s17, %s24
    %s67 = sor.u32 %s65, %s66
    %p68 = scmp.eq.s32.totalorder %s67, 0
    %s70 = sadd.s32 %s69, 1
    %s71 = scalar_select %p68, %s69, %s70
    %p74 = pneg %p68
    %p75 = scmp.eq.s32.totalorder %s9, 7
    %p76 = por %p74, %p75
    %p77 = scmp.ne.s32.totalorder %s69, %s72
    %p78 = scmp.eq.s32.totalorder %s9, 0
    %p79 = por %p77, %p78
    %p80 = scmp.ne.s32.totalorder %s69, %s72
    %p81 = scmp.eq.s32.totalorder %s14, 7
    %p82 = por %p80, %p81
    %p83 = scmp.ne.s32.totalorder %s72, %s73
    %p84 = scmp.eq.s32.totalorder %s14, 0
    %p85 = por %p83, %p84
    %p86 = scmp.ne.s32.totalorder %s72, %s73
    %p87 = scmp.eq.s32.totalorder %s15, 7
    %p88 = por %p86, %p87
    %p90 = scmp.ne.s32.totalorder %s73, %s89
    %p91 = scmp.eq.s32.totalorder %s15, 0
    %p92 = por %p90, %p91
    %s93 = sadd.s32 %s17, 1
    %s94 = smul.u32 %s93, 2
    %p95 = scmp.lt.s32.totalorder %s94, 7
    %s96 = scalar_select %p95, %s94, 7
    %s97 = sadd.s32 %s24, 1
    %s98 = smul.u32 %s97, 2
    %p99 = scmp.lt.s32.totalorder %s98, 7
    %s100 = scalar_select %p99, %s98, 7
    %s101 = ssub.s32 %s16, %s28
    %s102 = ssub.s32 %s96, %s100
    %s103 = sor.u32 %s101, %s102
    %p104 = scmp.eq.s32.totalorder %s103, 0
    %s106 = sadd.s32 %s105, 1
    %s107 = scalar_select %p104, %s105, %s106
    %p110 = pneg %p104
    %p111 = scmp.eq.s32.totalorder %s9, 7
    %p112 = por %p110, %p111
    %p113 = scmp.ne.s32.totalorder %s105, %s108
    %p114 = scmp.eq.s32.totalorder %s9, 0
    %p115 = por %p113, %p114
    %p116 = scmp.ne.s32.totalorder %s105, %s108
    %p117 = scmp.eq.s32.totalorder %s14, 7
    %p118 = por %p116, %p117
    %p119 = scmp.ne.s32.totalorder %s108, %s109
    %p120 = scmp.eq.s32.totalorder %s14, 0
    %p121 = por %p119, %p120
    %p122 = scmp.ne.s32.totalorder %s108, %s109
    %p123 = scmp.eq.s32.totalorder %s15, 7
    %p124 = por %p122, %p123
    %p126 = scmp.ne.s32.totalorder %s109, %s125
    %p127 = scmp.eq.s32.totalorder %s15, 0
    %p128 = por %p126, %p127
    %s129 = ssub.s32 %s16, %s28
    %s130 = ssub.s32 %s17, %s24
    %s131 = sor.u32 %s129, %s130
    %p132 = scmp.eq.s32.totalorder %s131, 0
    %s134 = sadd.s32 %s133, 1
    %s135 = scalar_select %p132, %s133, %s134
    %p138 = pneg %p132
    %p139 = scmp.eq.s32.totalorder %s9, 7
    %p140 = por %p138, %p139
    %p141 = scmp.ne.s32.totalorder %s133, %s136
    %p142 = scmp.eq.s32.totalorder %s9, 0
    %p143 = por %p141, %p142
    %p144 = scmp.ne.s32.totalorder %s133, %s136
    %p145 = scmp.eq.s32.totalorder %s14, 7
    %p146 = por %p144, %p145
    %p147 = scmp.ne.s32.totalorder %s136, %s137
    %p148 = scmp.eq.s32.totalorder %s14, 0
    %p149 = por %p147, %p148
    %p150 = scmp.ne.s32.totalorder %s136, %s137
    %p151 = scmp.eq.s32.totalorder %s15, 7
    %p152 = por %p150, %p151
    %p154 = scmp.ne.s32.totalorder %s137, %s153
    %p155 = scmp.eq.s32.totalorder %s15, 0
    %p156 = por %p154, %p155
    %p157 = scmp.le.s32.totalorder 1, %s9
    %p158 = scmp.lt.s32.totalorder %s9, 9
    %p159 = pnand %p157, %p158
    %p160 = pneg %p159
    // Predicated region
    $region9: #{tpu_custom_call.1} parent=5 // pred_check
      _
    $region10: #{tpu_custom_call.1} parent=5 // pred_check_branch
      %162 = sbr.rel (%p159) target = $region12
    $region11: #{tpu_custom_call.1} parent=5 // pred_region
      %s163 = ssub.s32 %s9, 1
    $region12: #{tpu_custom_call.1} parent=5 // pred_fallthru
      _
    %p164 = scmp.lt.s32.totalorder %s9, 8
    // Predicated region
    $region13: #{tpu_custom_call.1} parent=5 // pred_check
      %p165 = pneg %p164
    $region14: #{tpu_custom_call.1} parent=5 // pred_check_branch
      %167 = sbr.rel (%p165) target = $region16
    $region15: #{tpu_custom_call.1} parent=5 // pred_region
      // Predicated region
      $region17: #{tpu_custom_call.1} parent=15 // pred_check
        %p168 = pneg %p51
      $region18: #{tpu_custom_call.1} parent=15 // pred_check_branch
        %170 = sbr.rel (%p168) target = $region20
      $region19: #{tpu_custom_call.1} parent=15 // pred_region
        %s171 = smul.u32 %s17, 2
        %s172 = ssub.s32 %s171, 1
        %p173 = scmp.gt.s32.totalorder %s172, 0
        %s174 = scalar_select %p173, %s172, 0
        %p175 = scmp.lt.s32.totalorder %s16, 1
        %s176 = scalar_select %p175, %s16, 1
        %p177 = scmp.lt.s32.totalorder %s174, 7
        %s178 = scalar_select %p177, %s174, 7
        %s179 = smul.addr %s176, 8
        %s180 = sadd.s32 %s178, %s179
        %s181 = smul.addr %s180, 8
        %s182 = scalar_lea.vmem %s0, %s181
        %s183 = smul.u32 %s17, 2
        %s184 = ssub.s32 %s183, 1
        %p185 = scmp.gt.s32.totalorder %s184, 0
        %s186 = scalar_select %p185, %s184, 0
      $region20: #{tpu_custom_call.1} parent=15 // pred_fallthru
        _
      // Predicated region
      $region21: #{tpu_custom_call.1} parent=15 // pred_check
        %p187 = pneg %p79
      $region22: #{tpu_custom_call.1} parent=15 // pred_check_branch
        %189 = sbr.rel (%p187) target = $region24
      $region23: #{tpu_custom_call.1} parent=15 // pred_region
        %s190 = smul.u32 2, %s17
        %p191 = scmp.lt.s32.totalorder %s16, 1
        %s192 = scalar_select %p191, %s16, 1
        %p193 = scmp.lt.s32.totalorder %s190, 7
        %s194 = scalar_select %p193, %s190, 7
        %s195 = smul.addr %s192, 8
        %s196 = sadd.s32 %s194, %s195
        %s197 = smul.addr %s196, 8
        %s198 = scalar_lea.vmem %s1, %s197
        %s199 = smul.u32 2, %s17
      $region24: #{tpu_custom_call.1} parent=15 // pred_fallthru
        _
      // Predicated region
      $region25: #{tpu_custom_call.1} parent=15 // pred_check
        %p200 = pneg %p115
      $region26: #{tpu_custom_call.1} parent=15 // pred_check_branch
        %202 = sbr.rel (%p200) target = $region28
      $region27: #{tpu_custom_call.1} parent=15 // pred_region
        %s203 = sadd.s32 %s17, 1
        %s204 = smul.u32 %s203, 2
        %p205 = scmp.lt.s32.totalorder %s204, 7
        %s206 = scalar_select %p205, %s204, 7
        %p207 = scmp.lt.s32.totalorder %s16, 1
        %s208 = scalar_select %p207, %s16, 1
        %p209 = scmp.lt.s32.totalorder %s206, 7
        %s210 = scalar_select %p209, %s206, 7
        %s211 = smul.addr %s208, 8
        %s212 = sadd.s32 %s210, %s211
        %s213 = smul.addr %s212, 8
        %s214 = scalar_lea.vmem %s2, %s213
        %s215 = sadd.s32 %s17, 1
        %s216 = smul.u32 %s215, 2
        %p217 = scmp.lt.s32.totalorder %s216, 7
        %s218 = scalar_select %p217, %s216, 7
      $region28: #{tpu_custom_call.1} parent=15 // pred_fallthru
        _
    $region16: #{tpu_custom_call.1} parent=5 // pred_fallthru
      _
    %p219 = scmp.le.s32.totalorder 1, %s9
    %p220 = scmp.lt.s32.totalorder %s9, 9
    %p221 = pnand %p219, %p220
    %p222 = pneg %p221
    // Predicated region
    $region29: #{tpu_custom_call.1} parent=5 // pred_check
      _
    $region30: #{tpu_custom_call.1} parent=5 // pred_check_branch
      %224 = sbr.rel (%p221) target = $region32
    $region31: #{tpu_custom_call.1} parent=5 // pred_region
      %s225 = ssub.s32 %s9, 1
      %s226 = smul.u32 %s19, 2
      %s227 = ssub.s32 %s226, 1
      %p228 = scmp.gt.s32.totalorder %s227, 0
      %s229 = scalar_select %p228, %s227, 0
      %p230 = scmp.lt.s32.totalorder %s18, 1
      %s231 = scalar_select %p230, %s18, 1
      %p232 = scmp.lt.s32.totalorder %s229, 7
      %s233 = scalar_select %p232, %s229, 7
      %s234 = smul.addr %s231, 8
      %s235 = sadd.s32 %s233, %s234
      %s236 = smul.addr %s235, 8
      %s237 = scalar_lea.vmem %s0, %s236
      %p238 = pneg %p57
      %p239 = pneg %p54
      %s240 = smul.u32 2, %s19
      %p241 = scmp.lt.s32.totalorder %s18, 1
      %s242 = scalar_select %p241, %s18, 1
      %p243 = scmp.lt.s32.totalorder %s240, 7
      %s244 = scalar_select %p243, %s240, 7
      %s245 = smul.addr %s242, 8
      %s246 = sadd.s32 %s244, %s245
      %s247 = smul.addr %s246, 8
      %s248 = scalar_lea.vmem %s1, %s247
      %p249 = pneg %p85
      %p250 = pneg %p82
      %s251 = sadd.s32 %s19, 1
      %s252 = smul.u32 %s251, 2
      %p253 = scmp.lt.s32.totalorder %s252, 7
      %s254 = scalar_select %p253, %s252, 7
      %p255 = scmp.lt.s32.totalorder %s18, 1
      %s256 = scalar_select %p255, %s18, 1
      %p257 = scmp.lt.s32.totalorder %s254, 7
      %s258 = scalar_select %p257, %s254, 7
      %s259 = smul.addr %s256, 8
      %s260 = sadd.s32 %s258, %s259
      %s261 = smul.addr %s260, 8
      %s262 = scalar_lea.vmem %s2, %s261
      %p263 = pneg %p121
      %p264 = pneg %p118
      %p265 = pneg %p149
      %p266 = pneg %p146
      %s267 = smul.u32 2, %s19
      %p268 = scmp.lt.s32.totalorder %s18, 1
      %s269 = scalar_select %p268, %s18, 1
      %p270 = scmp.lt.s32.totalorder %s267, 7
      %s271 = scalar_select %p270, %s267, 7
      %s272 = smul.addr %s269, 8
      %s273 = sadd.s32 %s271, %s272
      %s274 = smul.addr %s273, 8
      %s275 = scalar_lea.vmem %s3, %s274
      %s276 = smul.u32 %s19, 2
      %s277 = ssub.s32 %s276, 1
      %p278 = scmp.gt.s32.totalorder %s277, 0
      %s279 = scalar_select %p278, %s277, 0
      %p280 = scmp.lt.s32.totalorder %s18, 1
      %s281 = scalar_select %p280, %s18, 1
      %p282 = scmp.lt.s32.totalorder %s279, 7
      %s283 = scalar_select %p282, %s279, 7
      %s284 = smul.addr %s281, 8
      %s285 = sadd.s32 %s283, %s284
      %s286 = smul.addr %s285, 8
      %s287 = scalar_lea.vmem %s0, %s286
      %s288 = smul.u32 %s19, 2
      %s289 = ssub.s32 %s288, 1
      %p290 = scmp.gt.s32.totalorder %s289, 0
      %s291 = scalar_select %p290, %s289, 0
      %s292 = smul.u32 2, %s19
      %p293 = scmp.lt.s32.totalorder %s18, 1
      %s294 = scalar_select %p293, %s18, 1
      %p295 = scmp.lt.s32.totalorder %s292, 7
      %s296 = scalar_select %p295, %s292, 7
      %s297 = smul.addr %s294, 8
      %s298 = sadd.s32 %s296, %s297
      %s299 = smul.addr %s298, 8
      %s300 = scalar_lea.vmem %s1, %s299
      %s301 = smul.u32 2, %s19
      %s302 = sadd.s32 %s19, 1
      %s303 = smul.u32 %s302, 2
      %p304 = scmp.lt.s32.totalorder %s303, 7
      %s305 = scalar_select %p304, %s303, 7
      %p306 = scmp.lt.s32.totalorder %s18, 1
      %s307 = scalar_select %p306, %s18, 1
      %p308 = scmp.lt.s32.totalorder %s305, 7
      %s309 = scalar_select %p308, %s305, 7
      %s310 = smul.addr %s307, 8
      %s311 = sadd.s32 %s309, %s310
      %s312 = smul.addr %s311, 8
      %s313 = scalar_lea.vmem %s2, %s312
      %s314 = sadd.s32 %s19, 1
      %s315 = smul.u32 %s314, 2
      %p316 = scmp.lt.s32.totalorder %s315, 7
      %s317 = scalar_select %p316, %s315, 7
      %s318 = smul.u32 2, %s19
      %p319 = scmp.lt.s32.totalorder %s18, 1
      %s320 = scalar_select %p319, %s18, 1
      %p321 = scmp.lt.s32.totalorder %s318, 7
      %s322 = scalar_select %p321, %s318, 7
      %s323 = smul.addr %s320, 8
      %s324 = sadd.s32 %s322, %s323
      %s325 = smul.addr %s324, 8
      %s326 = scalar_lea.vmem %s3, %s325
      %s327 = smul.u32 2, %s19
      %v328 = vld [vmem:[%s300] sm:$0xff]
      %v329 = vld [vmem:[%s300 + $0x8] sm:$0xff]
      %vm330 = vcmask 261120
      %331 = vst.msk [vmem:[#allocation2 + $0x2] sm:$0xff] %vm330, %v328
      %332 = vst.msk [vmem:[#allocation2 + $0xa] sm:$0xff] %vm330, %v329
      %p333 = scmp.eq.s32.totalorder %s19, 0
      // Predicated region
      $region33: #{tpu_custom_call.1} parent=31 // pred_check
        %p334 = pneg %p333
      $region34: #{tpu_custom_call.1} parent=31 // pred_check_branch
        %336 = sbr.rel (%p334) target = $region36
      $region35: #{tpu_custom_call.1} parent=31 // pred_region
        %v337 = vld [vmem:[%s300] sm:$0x1]
        %v338 = vlaneseq
        %v339 = vshrl.u32 %v338, 7
        %v340 = vsub.s32 0, %v339
        %v341 = vrot.slane %v337, %v340
        %vm342 = vcmask 254976
        %343 = vst.msk [vmem:[#allocation2] sm:$0x3] %vm342, %v341
      $region36: #{tpu_custom_call.1} parent=31 // pred_fallthru
        _
      %p344 = scmp.gt.s32.totalorder %s19, 0
      // Predicated region
      $region37: #{tpu_custom_call.1} parent=31 // pred_check
        %p345 = pneg %p344
      $region38: #{tpu_custom_call.1} parent=31 // pred_check_branch
        %347 = sbr.rel (%p345) target = $region40
      $region39: #{tpu_custom_call.1} parent=31 // pred_region
        %v348 = vld [vmem:[%s287 + $0x6] sm:$0x3]
        %vm349 = vcmask 254976
        %350 = vst.msk [vmem:[#allocation2] sm:$0x3] %vm349, %v348
      $region40: #{tpu_custom_call.1} parent=31 // pred_fallthru
        _
      %p351 = scmp.eq.s32.totalorder %s19, 3
      // Predicated region
      $region41: #{tpu_custom_call.1} parent=31 // pred_check
        %p352 = pneg %p351
      $region42: #{tpu_custom_call.1} parent=31 // pred_check_branch
        %354 = sbr.rel (%p352) target = $region44
      $region43: #{tpu_custom_call.1} parent=31 // pred_region
        %v355 = vld [vmem:[%s300 + $0xf] sm:$0x1]
        %v356 = vlaneseq
        %v357 = vshrl.u32 %v356, 7
        %v358 = vsub.s32 0, %v357
        %v359 = vrot.slane %v355, %v358
        %vm360 = vcmask 254976
        %361 = vst.msk [vmem:[#allocation2 + $0x12] sm:$0x3] %vm360, %v359
      $region44: #{tpu_custom_call.1} parent=31 // pred_fallthru
        _
      %p362 = scmp.lt.s32.totalorder %s19, 3
      // Predicated region
      $region45: #{tpu_custom_call.1} parent=31 // pred_check
        %p363 = pneg %p362
      $region46: #{tpu_custom_call.1} parent=31 // pred_check_branch
        %365 = sbr.rel (%p363) target = $region48
      $region47: #{tpu_custom_call.1} parent=31 // pred_region
        %v366 = vld [vmem:[%s313] sm:$0x3]
        %vm367 = vcmask 254976
        %368 = vst.msk [vmem:[#allocation2 + $0x12] sm:$0x3] %vm367, %v366
      $region48: #{tpu_custom_call.1} parent=31 // pred_fallthru
        _
      %v369 = vld [vmem:[#allocation2] sm:$0xff]
      %v370 = vld [vmem:[#allocation2 + $0x8] sm:$0xff]
      %v371 = vadd.f32 %v369, 0.0
      %v372 = vadd.f32 %v370, 0.0
      %v373 = vld [vmem:[#allocation2 + $0x1] sm:$0xff]
      %v374 = vld [vmem:[#allocation2 + $0x9] sm:$0xff]
      %v375 = vadd.f32 %v371, %v373
      %v376 = vadd.f32 %v372, %v374
      %v377 = vld [vmem:[#allocation2 + $0x2] sm:$0xff]
      %v378 = vld [vmem:[#allocation2 + $0xa] sm:$0xff]
      %v379 = vadd.f32 %v375, %v377
      %v380 = vadd.f32 %v376, %v378
      %v381 = vld [vmem:[#allocation2 + $0x3] sm:$0xff]
      %v382 = vld [vmem:[#allocation2 + $0xb] sm:$0xff]
      %v383 = vadd.f32 %v379, %v381
      %v384 = vadd.f32 %v380, %v382
      %v385 = vld [vmem:[#allocation2 + $0x4] sm:$0xff]
      %v386 = vld [vmem:[#allocation2 + $0xc] sm:$0xff]
      %v387 = vadd.f32 %v383, %v385
      %v388 = vadd.f32 %v384, %v386
      %v389 = vmul.f32 %v387, 0.2
      %v390 = vmul.f32 %v388, 0.2
      %391 = vst.msk [vmem:[%s326] sm:$0xff] %vm330, %v389
      %392 = vst.msk [vmem:[%s326 + $0x8] sm:$0xff] %vm330, %v390
      %s393 = smul.u32 2, %s19
      %p394 = scmp.lt.s32.totalorder %s18, 1
      %s395 = scalar_select %p394, %s18, 1
      %p396 = scmp.lt.s32.totalorder %s393, 7
      %s397 = scalar_select %p396, %s393, 7
      %s398 = smul.addr %s395, 8
      %s399 = sadd.s32 %s397, %s398
      %s400 = smul.addr %s399, 8
      %s401 = scalar_lea.vmem %s3, %s400
      // Predicated region
      $region49: #{tpu_custom_call.1} parent=31 // pred_check
        %p402 = pneg %p146
      $region50: #{tpu_custom_call.1} parent=31 // pred_check_branch
        %404 = sbr.rel (%p402) target = $region52
      $region51: #{tpu_custom_call.1} parent=31 // pred_region
        %s405 = smul.u32 2, %s19
      $region52: #{tpu_custom_call.1} parent=31 // pred_fallthru
        _
    $region32: #{tpu_custom_call.1} parent=5 // pred_fallthru
      _
    %p406 = scmp.le.s32.totalorder 2, %s9
    // Predicated region
    $region53: #{tpu_custom_call.1} parent=5 // pred_check
      %p407 = pneg %p406
    $region54: #{tpu_custom_call.1} parent=5 // pred_check_branch
      %409 = sbr.rel (%p407) target = $region56
    $region55: #{tpu_custom_call.1} parent=5 // pred_region
      %s410 = ssub.s32 %s9, 2
      // Predicated region
      $region57: #{tpu_custom_call.1} parent=55 // pred_check
        %p411 = pneg %p152
      $region58: #{tpu_custom_call.1} parent=55 // pred_check_branch
        %413 = sbr.rel (%p411) target = $region60
      $region59: #{tpu_custom_call.1} parent=55 // pred_region
        %s414 = smul.u32 2, %s21
        %p415 = scmp.lt.s32.totalorder %s20, 1
        %s416 = scalar_select %p415, %s20, 1
        %p417 = scmp.lt.s32.totalorder %s414, 7
        %s418 = scalar_select %p417, %s414, 7
        %s419 = smul.addr %s416, 8
        %s420 = sadd.s32 %s418, %s419
        %s421 = smul.addr %s420, 8
        %s422 = scalar_lea.vmem %s3, %s421
      $region60: #{tpu_custom_call.1} parent=55 // pred_fallthru
        _
    $region56: #{tpu_custom_call.1} parent=5 // pred_fallthru
      _
  $region6: #{tpu_custom_call.1} parent=0 // loop_footer
    %s13 = sadd.s32 1, %s9
  $region7: #{tpu_custom_call.1} parent=0 // loop_footer_branch
    %8 = sbr.rel target = $region3
  $region8: #{tpu_custom_call.1} parent=0 // loop_exit
    _

</llo_original>
